<compile_context>
chip_gen: v6e
topology: v6e:2x2x1
jax: 0.10.0
libtpu: 0.0.40
codegen_flags: <defaults>
</compile_context>

<pallas_src>
import functools

import jax
import jax.numpy as jnp
from jax.experimental import pallas as pl
from jax.experimental.pallas import tpu as pltpu


def _round_up(x: int, m: int) -> int:
    return ((x + m - 1) // m) * m


def _vmem_budget_bytes() -> int:
    """Single generation-aware VMEM number used for both tile sizing and the limit."""
    cap = None
    try:
        info = pltpu.get_tpu_info()
        cap = int(getattr(info, "vmem_capacity_bytes", 0)) or None
    except Exception:
        cap = None
    if cap is None:
        cap = 64 * 1024 * 1024  # conservative: v7x per-TensorCore physical VMEM
    # >=16 MiB headroom for Mosaic internal scratch, hard cap at 96 MiB.
    return int(max(32 * 1024 * 1024, min(cap - 16 * 1024 * 1024, 96 * 1024 * 1024)))


# ----------------------------------------------------------------------------
# Kernels
# ----------------------------------------------------------------------------
def _gcn_tiled_kernel(x_ref, lt_ref, w_ref, o_ref, acc_ref, *, tile):
    """One (j, k) grid step.

    x_ref   : (B*I, N_pad)    bf16  -- X_flat, fully VMEM-resident (constant index map)
    lt_ref  : (tk, tn)        bf16  -- block (k, j) of pre-transposed L^T
    w_ref   : (I, O_pad)      f32
    o_ref   : (B, tn, O_pad)  f32   -- j-th N-row block of the (B, N_pad, O_pad) output
    acc_ref : (B*I, tn)       f32   -- VMEM accumulator, persists across k
    """
    k = pl.program_id(1)

    @pl.when(k == 0)
    def _init():
        acc_ref[...] = jnp.zeros_like(acc_ref)

    # Plain (non-transposed) MXU contraction against the pre-transposed L^T block:
    #   acc[bi, n] += sum_K X_flat[bi, K] * L[n, K]  ==  (L @ x2)^T
    off = pl.multiple_of(k * tile, 128)
    x_blk = x_ref[:, pl.ds(off, tile)]                       # (B*I, tk) bf16
    acc_ref[...] += jnp.dot(x_blk, lt_ref[...],
                            preferred_element_type=jnp.float32)

    @pl.when(k == pl.num_programs(1) - 1)
    def _finalize():
        i_dim = w_ref.shape[0]
        batch = o_ref.shape[0]
        w = w_ref[...]

        def body(b, carry):
            row = b * i_dim
            if i_dim % 8 == 0:
                row = pl.multiple_of(row, 8)                  # sublane-aligned slice
            y_b = acc_ref[pl.ds(row, i_dim), :]               # (I, tn) f32
            out_b = jax.lax.dot_general(                      # (tn, O_pad)
                y_b, w,
                dimension_numbers=(((0,), (0,)), ((), ())),
                preferred_element_type=jnp.float32)
            o_ref[b, :, :] = jnp.tanh(out_b)
            return carry

        jax.lax.fori_loop(0, batch, body, 0, unroll=True)


def _gcn_small_kernel(x_ref, lt_ref, w_ref, o_ref):
    """Single-block path for tiny problems: no padding, no grid, f32 throughout.

    x_ref: (B*I, N), lt_ref: (N, N) = L^T, w_ref: (I, O), o_ref: (B, N, O)
    """
    y = jnp.dot(x_ref[...], lt_ref[...],
                preferred_element_type=jnp.float32)           # (B*I, N) == ax^T
    i_dim = w_ref.shape[0]
    batch = o_ref.shape[0]
    w = w_ref[...]
    for b in range(batch):                                    # tiny & static
        y_b = y[b * i_dim:(b + 1) * i_dim, :]                 # (I, N)
        out_b = jax.lax.dot_general(
            y_b, w,
            dimension_numbers=(((0,), (0,)), ((), ())),
            preferred_element_type=jnp.float32)               # (N, O)
        o_ref[b, :, :] = jnp.tanh(out_b)


# ----------------------------------------------------------------------------
# Builder: one-time prep of static operands + jitted forward
# ----------------------------------------------------------------------------
def make_gcn_forward(laplacian, weights, batch_size, *,
                     max_tile=None, force_tiled=False, vmem_budget_bytes=None):
    """Precompute (once) the padded/cast/pre-transposed static operands and return a
    callable forward(x): (B, I, N) -> (B, N, O)."""
    n = int(laplacian.shape[0])
    i_dim, o_dim = int(weights.shape[0]), int(weights.shape[1])
    b = int(batch_size)
    bi = b * i_dim
    budget = int(vmem_budget_bytes or _vmem_budget_bytes())

    # Hoisted static prep: L is a fixed buffer; pre-transpose so the kernel's matmul
    # is a plain (non-transposed) contraction. Exact for non-symmetric L too.
    lap_t = jnp.asarray(laplacian, jnp.float32).T             # (N, N), L^T

    use_small = (not force_tiled) and n <= 256 and bi <= 1024

    # --------------------------- tiny single-block path ---------------------------
    if use_small:
        w_f32 = jnp.asarray(weights, jnp.float32)
        small_call = pl.pallas_call(
            _gcn_small_kernel,
            out_shape=jax.ShapeDtypeStruct((b, n, o_dim), jnp.float32),
        )

        def _fwd_small(x, lt, w):
            return small_call(x.reshape(bi, n).astype(jnp.float32), lt, w)

        fwd = jax.jit(_fwd_small)
        return lambda x: fwd(x, lap_t, w_f32)

    # ------------------------------- tiled path -----------------------------------
    o_pad = _round_up(o_dim, 128)
    n_full = _round_up(n, 128)

    candidates = sorted({min(t, n_full) for t in (4096, 2048, 1024, 512, 256, 128)},
                        reverse=True)
    if max_tile is not None:
        candidates = [t for t in candidates if t <= max_tile] or [128]

    tile = None
    for t in candidates:
        n_pad_t = _round_up(n, t)
        need = (2 * t * t * 2              # L^T tile, bf16, double-buffered
                + 2 * bi * n_pad_t * 2     # resident X, bf16 (conservative: 2 bufs)
                + bi * t * 4               # f32 accumulator scratch
                + 2 * b * t * o_pad * 4    # output tile, f32, double-buffered
                + 2 * i_dim * o_pad * 4)   # weights, f32
        if need <= budget:
            tile = t
            break
    if tile is None:
        raise ValueError(
            f"GCN Pallas kernel: VMEM budget {budget} B too small for "
            f"B*I={bi}, N={n}, O={o_dim} even at tile=128.")

    n_pad = _round_up(n, tile)

    # Static operand prep, hoisted out of the per-call path.
    lt_p = jnp.pad(lap_t.astype(jnp.bfloat16),
                   ((0, n_pad - n), (0, n_pad - n)))          # padded L^T, bf16
    w_p = jnp.pad(jnp.asarray(weights, jnp.float32),
                  ((0, 0), (0, o_pad - o_dim)))               # padded W, f32

    grid = (n_pad // tile, n_pad // tile)  # (j: output N-tiles, k: contraction tiles)

    cost = pl.CostEstimate(
        flops=2 * n * n * bi + 2 * n * bi * o_dim,
        transcendentals=n * b * o_dim,
        bytes_accessed=(bi * n_pad * 2          # X read once (resident)
                        + n_pad * n_pad * 2     # L^T streamed once
                        + i_dim * o_pad * 4
                        + b * n_pad * o_pad * 4),
    )

    tiled_call = pl.pallas_call(
        functools.partial(_gcn_tiled_kernel, tile=tile),
        out_shape=jax.ShapeDtypeStruct((b, n_pad, o_pad), jnp.float32),
        grid_spec=pltpu.PrefetchScalarGridSpec(
            num_scalar_prefetch=0,
            grid=grid,
            in_specs=[
                pl.BlockSpec((bi, n_pad), lambda j, k: (0, 0)),      # X, VMEM-resident
                pl.BlockSpec((tile, tile), lambda j, k: (k, j)),     # L^T block (k, j)
                pl.BlockSpec((i_dim, o_pad), lambda j, k: (0, 0)),   # W
            ],
            out_specs=pl.BlockSpec((b, tile, o_pad), lambda j, k: (0, j, 0)),
            scratch_shapes=[pltpu.VMEM((bi, tile), jnp.float32)],
        ),
        compiler_params=pltpu.CompilerParams(
            dimension_semantics=("parallel", "arbitrary"),
            vmem_limit_bytes=budget,
        ),
        cost_estimate=cost,
    )

    pad_n = n_pad - n

    def _fwd_tiled(x, lt, w):
        x_flat = x.reshape(bi, n).astype(jnp.bfloat16)        # free row-major view
        if pad_n:
            x_flat = jnp.pad(x_flat, ((0, 0), (0, pad_n)))
        out_pad = tiled_call(x_flat, lt, w)
        return out_pad[:, :n, :o_dim]                          # already (B, N, O)

    fwd = jax.jit(_fwd_tiled)
    return lambda x: fwd(x, lt_p, w_p)


# ----------------------------------------------------------------------------
# Parameter / buffer construction (deterministic, in-script)
# ----------------------------------------------------------------------------
def calculate_laplacian_with_self_loop(adj):
    """D^{-1/2} (A + I) D^{-1/2} (same as the T-GCN helper)."""
    a_hat = adj + jnp.eye(adj.shape[0], dtype=adj.dtype)
    deg = a_hat.sum(axis=1)
    d_inv_sqrt = jnp.power(deg, -0.5)
    d_inv_sqrt = jnp.where(jnp.isinf(d_inv_sqrt), 0.0, d_inv_sqrt)
    return (a_hat * d_inv_sqrt[:, None]) * d_inv_sqrt[None, :]


def xavier_uniform_tanh(key, fan_in, fan_out):
    gain = 5.0 / 3.0  # nn.init.calculate_gain('tanh')
    bound = gain * jnp.sqrt(6.0 / (fan_in + fan_out))
    return jax.random.uniform(
        key, (fan_in, fan_out), dtype=jnp.float32, minval=-bound, maxval=bound)


def _reference(x, lap, w):
    """Pure-JAX f32 mirror of the PyTorch forward."""
    b, i, n = x.shape
    x2 = jnp.transpose(x, (2, 0, 1)).reshape(n, b * i)
    ax = (lap @ x2).reshape(n * b, i)
    return jnp.transpose(jnp.tanh(ax @ w).reshape(n, b, w.shape[1]), (1, 0, 2))


if __name__ == "__main__":
    key = jax.random.PRNGKey(0)
    k_adj, k_x, k_w, k_adj2, k_x2 = jax.random.split(key, 5)

    batch_size, input_dim, output_dim = 2, 8, 32

    w = xavier_uniform_tanh(k_w, input_dim, output_dim)

    # --- tiny problem (N=16): single-block path, no padding machinery -------------
    n1 = 16
    adj1 = jax.random.uniform(k_adj, (n1, n1), dtype=jnp.float32)
    adj1 = (adj1 + adj1.T) * 0.5
    lap1 = calculate_laplacian_with_self_loop(adj1)
    x1 = jax.random.normal(k_x, (batch_size, input_dim, n1), dtype=jnp.float32)

    fwd1 = make_gcn_forward(lap1, w, batch_size)
    out1 = jax.block_until_ready(fwd1(x1))
    assert out1.shape == (batch_size, n1, output_dim)
    ref1 = _reference(x1, lap1, w)
    assert jnp.allclose(out1, ref1, atol=2e-2, rtol=2e-2), float(
        jnp.max(jnp.abs(out1 - ref1)))

    # --- moderate problem (N=256, forced tile=128): exercise the tiled pipeline ---
    n2 = 256
    adj2 = jax.random.uniform(k_adj2, (n2, n2), dtype=jnp.float32)
    adj2 = (adj2 + adj2.T) * 0.5
    lap2 = calculate_laplacian_with_self_loop(adj2)
    x2 = jax.random.normal(k_x2, (batch_size, input_dim, n2), dtype=jnp.float32)

    fwd2 = make_gcn_forward(lap2, w, batch_size, force_tiled=True, max_tile=128)
    out2 = jax.block_until_ready(fwd2(x2))
    assert out2.shape == (batch_size, n2, output_dim)
    ref2 = _reference(x2, lap2, w)
    # bf16 MXU inputs for the big matmul (f32 accumulate) -> bf16-level tolerance.
    assert jnp.allclose(out2, ref2, atol=2e-2, rtol=2e-2), float(
        jnp.max(jnp.abs(out2 - ref2)))

    print("KERNEL_OK")
</pallas_src>

<mosaic_0001>
module attributes {stable_mosaic.version = 11 : i64} {
  func.func @_gcn_small_kernel(%arg0: memref<16x16xf32, #tpu.memory_space<vmem>>, %arg1: memref<16x16xf32, #tpu.memory_space<vmem>>, %arg2: memref<8x32xf32, #tpu.memory_space<vmem>>, %arg3: memref<2x16x32xf32, #tpu.memory_space<vmem>>) attributes {dimension_semantics = [], scalar_prefetch = 0 : i64, scratch_operands = 0 : i64, tpu.core_type = #tpu.core_type<tc>} {
    %c0 = arith.constant 0 : index
    %c0_0 = arith.constant 0 : index
    %0 = vector.load %arg0[%c0, %c0_0] : memref<16x16xf32, #tpu.memory_space<vmem>>, vector<16x16xf32>
    %c0_1 = arith.constant 0 : index
    %c0_2 = arith.constant 0 : index
    %1 = vector.load %arg1[%c0_1, %c0_2] : memref<16x16xf32, #tpu.memory_space<vmem>>, vector<16x16xf32>
    %cst = arith.constant dense<0.000000e+00> : vector<16x16xf32>
    %2 = tpu.matmul %0, %1, %cst {dimension_numbers = #tpu.dot_dimension_numbers<[1], [0], [0], [1], [0, 0, 1, 1], [], []>} : vector<16x16xf32>, vector<16x16xf32>, vector<16x16xf32> -> vector<16x16xf32>
    %c0_3 = arith.constant 0 : index
    %c0_4 = arith.constant 0 : index
    %3 = vector.load %arg2[%c0_3, %c0_4] : memref<8x32xf32, #tpu.memory_space<vmem>>, vector<8x32xf32>
    %4 = vector.extract_strided_slice %2 {offsets = [0, 0], sizes = [8, 16], strides = [1, 1]} : vector<16x16xf32> to vector<8x16xf32>
    %cst_5 = arith.constant dense<0.000000e+00> : vector<16x32xf32>
    %5 = tpu.matmul %4, %3, %cst_5 {dimension_numbers = #tpu.dot_dimension_numbers<[0], [0], [1], [1], [0, 1, 1, 1], [], []>} : vector<8x16xf32>, vector<8x32xf32>, vector<16x32xf32> -> vector<16x32xf32>
    %6 = math.tanh %5 : vector<16x32xf32>
    %c0_6 = arith.constant 0 : index
    %c0_7 = arith.constant 0 : index
    %c0_8 = arith.constant 0 : index
    %7 = vector.load %arg3[%c0_6, %c0_7, %c0_8] : memref<2x16x32xf32, #tpu.memory_space<vmem>>, vector<1x16x32xf32>
    %8 = vector.shape_cast %7 : vector<1x16x32xf32> to vector<16x32xf32>
    %9 = vector.shape_cast %6 : vector<16x32xf32> to vector<1x16x32xf32>
    tpu.vector_store %arg3[%c0_6, %c0_7, %c0_8], %9 {strides = array<i32>} : memref<2x16x32xf32, #tpu.memory_space<vmem>>, vector<1x16x32xf32>,
    %10 = vector.extract_strided_slice %2 {offsets = [8, 0], sizes = [8, 16], strides = [1, 1]} : vector<16x16xf32> to vector<8x16xf32>
    %cst_9 = arith.constant dense<0.000000e+00> : vector<16x32xf32>
    %11 = tpu.matmul %10, %3, %cst_9 {dimension_numbers = #tpu.dot_dimension_numbers<[0], [0], [1], [1], [0, 1, 1, 1], [], []>} : vector<8x16xf32>, vector<8x32xf32>, vector<16x32xf32> -> vector<16x32xf32>
    %12 = math.tanh %11 : vector<16x32xf32>
    %c1 = arith.constant 1 : index
    %c0_10 = arith.constant 0 : index
    %c0_11 = arith.constant 0 : index
    %13 = vector.load %arg3[%c1, %c0_10, %c0_11] : memref<2x16x32xf32, #tpu.memory_space<vmem>>, vector<1x16x32xf32>
    %14 = vector.shape_cast %13 : vector<1x16x32xf32> to vector<16x32xf32>
    %15 = vector.shape_cast %12 : vector<16x32xf32> to vector<1x16x32xf32>
    tpu.vector_store %arg3[%c1, %c0_10, %c0_11], %15 {strides = array<i32>} : memref<2x16x32xf32, #tpu.memory_space<vmem>>, vector<1x16x32xf32>,
    return
  }
}

</mosaic_0001>

<llo_original>
// kernel: _fwd_small.1
$region0: #{_fwd_small.1}
  #allocation0 [shape = 'u32[]', space=smem, size = 0x4, offset = 0x4, fixed_abs, tag = 'smem constant byte address 0x4 - core index']
  #allocation1 [shape = 'u32[144,128]{1,0:T(1,128)}', space=vmem, size = 0x12000, scoped, tag = 'internal scratch']
  %s0 = inlined_call_operand.hbm [shape: f32[16,16], index: 0, kind: input, shape index: {}]
  %s1 = inlined_call_operand.hbm [shape: f32[16,16], index: 1, kind: input, shape index: {}]
  %s2 = inlined_call_operand.hbm [shape: f32[8,32], index: 2, kind: input, shape index: {}]
  %s3 = inlined_call_operand.hbm [shape: f32[2,16,32], index: 3, kind: output, shape index: {}]
  %s4 = sld [smem:[#allocation0]]
  $region34: #{_fwd_small.1} parent=0
    _
  %s6 = ssub.s32 1, %s4
  %s7 = scalar_select 0, %s6, %s4
  $region1: #{_fwd_small.1} parent=0
    #allocation2 [shape = 'u8[8192]{0}', space=vmem, size = 0x2000, scoped, tag = 'input window, operand 0, single buffered']
    #allocation3 [shape = 's32[1]{0}', space=sflag, size = 0x4, scoped, tag = 'scoped memory for _fwd_small.1']
    #allocation4 [shape = 's32[1]{0}', space=sflag, size = 0x4, scoped, tag = 'scoped memory for _fwd_small.1']
    #allocation5 [shape = 'u8[8192]{0}', space=vmem, size = 0x2000, scoped, tag = 'input window, operand 1, single buffered']
    #allocation6 [shape = 's32[1]{0}', space=sflag, size = 0x4, scoped, tag = 'scoped memory for _fwd_small.1']
    #allocation7 [shape = 'u8[4096]{0}', space=vmem, size = 0x1000, scoped, tag = 'input window, operand 2, single buffered']
    #allocation8 [shape = 'u8[16384]{0}', space=vmem, size = 0x4000, scoped, tag = 'output window, operand 0, single buffered']
    %8 = vsyncpa [#allocation3], 0
    %9 = vsyncpa [#allocation6], 0
    %10 = vsyncpa [#allocation4], 0
    // Predicated region
    $region2: #{_fwd_small.1} parent=1 // pred_check
      _
    $region3: #{_fwd_small.1} parent=1 // pred_check_branch
      %12 = sbr.rel (0) target = $region5
    $region4: #{_fwd_small.1} parent=1 // pred_region
      %s14 = ssub.s32 256, 256
      %15 = vsyncadd [#allocation3], %s14
      %s16 = sshll.u32 [#allocation2], 4
      %s17 = int_to_ptr.vmem [resolvable:$true] %s16
      %22 = dma.hbm_to_vmem [thread:$0]  %s0, 256, %s17, [#allocation3], 128, 128, 8
    $region5: #{_fwd_small.1} parent=1 // pred_fallthru
      _
    // Predicated region
    $region6: #{_fwd_small.1} parent=1 // pred_check
      _
    $region7: #{_fwd_small.1} parent=1 // pred_check_branch
      %24 = sbr.rel (0) target = $region9
    $region8: #{_fwd_small.1} parent=1 // pred_region
      %s26 = ssub.s32 256, 256
      %27 = vsyncadd [#allocation6], %s26
      %s28 = sshll.u32 [#allocation5], 4
      %s29 = int_to_ptr.vmem [resolvable:$true] %s28
      %34 = dma.hbm_to_vmem [thread:$0]  %s1, 256, %s29, [#allocation6], 128, 128, 8
    $region9: #{_fwd_small.1} parent=1 // pred_fallthru
      _
    // Predicated region
    $region10: #{_fwd_small.1} parent=1 // pred_check
      _
    $region11: #{_fwd_small.1} parent=1 // pred_check_branch
      %36 = sbr.rel (0) target = $region13
    $region12: #{_fwd_small.1} parent=1 // pred_region
      %s38 = ssub.s32 128, 128
      %39 = vsyncadd [#allocation6], %s38
      %s41 = sshll.u32 [#allocation7], 4
      %s42 = int_to_ptr.vmem [resolvable:$true] %s41
      %44 = dma.hbm_to_vmem [thread:$0]  %s2, 128, %s42, [#allocation6]
    $region13: #{_fwd_small.1} parent=1 // pred_fallthru
      _
    // Predicated region
    $region14: #{_fwd_small.1} parent=1 // pred_check
      _
    $region15: #{_fwd_small.1} parent=1 // pred_check_branch
      %46 = sbr.rel (0) target = $region17
    $region16: #{_fwd_small.1} parent=1 // pred_region
      %47 = dma.done [#allocation3], 256
    $region17: #{_fwd_small.1} parent=1 // pred_fallthru
      _
    // Predicated region
    $region18: #{_fwd_small.1} parent=1 // pred_check
      _
    $region19: #{_fwd_small.1} parent=1 // pred_check_branch
      %49 = sbr.rel (0) target = $region21
    $region20: #{_fwd_small.1} parent=1 // pred_region
      %50 = dma.done [#allocation6], 256
    $region21: #{_fwd_small.1} parent=1 // pred_fallthru
      _
    // Predicated region
    $region22: #{_fwd_small.1} parent=1 // pred_check
      _
    $region23: #{_fwd_small.1} parent=1 // pred_check_branch
      %52 = sbr.rel (0) target = $region25
    $region24: #{_fwd_small.1} parent=1 // pred_region
      %53 = dma.done [#allocation6], 128
    $region25: #{_fwd_small.1} parent=1 // pred_fallthru
      _
    %v54 = vld [vmem:[#allocation2] sm:$0xff]
    %v55 = vld [vmem:[#allocation2 + $0x8] sm:$0xff]
    %v56 = vld [vmem:[#allocation5] sm:$0xff]
    %v57 = vld [vmem:[#allocation5 + $0x8] sm:$0xff]
    %vm58 = vcmask 130048
    %v60 = vsel %vm58, %v54, 0
    %v63 = vsel %vm58, %v55, 0
    %65 = vmatprep.subr.mxu0 0.0
    %66 = vmatpush1.msra.mxu0 0.0
    %67 = vmatprep.subr.mxu0 0.0
    %68 = vmatpush1.msra.mxu0 0.0
    %69 = vmatprep.subr.mxu0 0.0
    %70 = vmatpush1.msra.mxu0 0.0
    %71 = vmatprep.subr.mxu0 0.0
    %72 = vmatpush1.msra.mxu0 0.0
    %73 = vmatprep.subr.mxu0 0.0
    %74 = vmatpush1.msra.mxu0 0.0
    %75 = vmatprep.subr.mxu0 0.0
    %76 = vmatpush1.msra.mxu0 0.0
    %77 = vmatprep.subr.mxu0 0.0
    %78 = vmatpush1.msra.mxu0 0.0
    %79 = vmatprep.subr.mxu0 0.0
    %80 = vmatpush1.msra.mxu0 0.0
    %81 = vmatprep.subr.mxu0 0.0
    %82 = vmatpush1.msra.mxu0 0.0
    %83 = vmatprep.subr.mxu0 0.0
    %84 = vmatpush1.msra.mxu0 0.0
    %85 = vmatprep.subr.mxu0 0.0
    %86 = vmatpush1.msra.mxu0 0.0
    %87 = vmatprep.subr.mxu0 0.0
    %88 = vmatpush1.msra.mxu0 0.0
    %89 = vmatprep.subr.mxu0 0.0
    %90 = vmatpush1.msra.mxu0 0.0
    %91 = vmatprep.subr.mxu0 0.0
    %92 = vmatpush1.msra.mxu0 0.0
    %93 = vmatprep.subr.mxu0 0.0
    %94 = vmatpush1.msra.mxu0 %v57
    %95 = vmatprep.subr.mxu0 0.0
    %96 = vmatpush1.msra.mxu0 %v56
    %97 = vmatprep.subr.mxu0 0.0
    %98 = vmatpush2.msra.mxu0 0.0
    %99 = vmatprep.subr.mxu0 0.0
    %100 = vmatpush2.msra.mxu0 0.0
    %101 = vmatprep.subr.mxu0 0.0
    %102 = vmatpush2.msra.mxu0 0.0
    %103 = vmatprep.subr.mxu0 0.0
    %104 = vmatpush2.msra.mxu0 0.0
    %105 = vmatprep.subr.mxu0 0.0
    %106 = vmatpush2.msra.mxu0 0.0
    %107 = vmatprep.subr.mxu0 0.0
    %108 = vmatpush2.msra.mxu0 0.0
    %109 = vmatprep.subr.mxu0 0.0
    %110 = vmatpush2.msra.mxu0 0.0
    %111 = vmatprep.subr.mxu0 0.0
    %112 = vmatpush2.msra.mxu0 0.0
    %113 = vmatprep.subr.mxu0 0.0
    %114 = vmatpush2.msra.mxu0 0.0
    %115 = vmatprep.subr.mxu0 0.0
    %116 = vmatpush2.msra.mxu0 0.0
    %117 = vmatprep.subr.mxu0 0.0
    %118 = vmatpush2.msra.mxu0 0.0
    %119 = vmatprep.subr.mxu0 0.0
    %120 = vmatpush2.msra.mxu0 0.0
    %121 = vmatprep.subr.mxu0 0.0
    %122 = vmatpush2.msra.mxu0 0.0
    %123 = vmatprep.subr.mxu0 0.0
    %124 = vmatpush2.msra.mxu0 0.0
    %125 = vmatprep.subr.mxu0 0.0
    %126 = vmatpush2.msra.mxu0 0.0
    %127 = vmatprep.subr.mxu0 0.0
    %128 = vmatpush2.msra.mxu0 0.0
    %129 = vmatprep.mubr.f32.mxu0 0.0
    %130 = vmatmul.mubr.f32.gmra.mxu0 %v60
    %v131 = vpop.f32.mrf.mxu0
    %v132 = vadd.f32 0.0, %v131
    %v133 = vpop.f32.mrf.mxu0
    %134 = vmatprep.mubr.f32.mxu0 0.0
    %135 = vmatmul.mubr.f32.gmra.mxu0 %v63
    %v136 = vpop.f32.mrf.mxu0
    %v137 = vadd.f32 0.0, %v136
    %v138 = vpop.f32.mrf.mxu0
    %139 = vdwg.mxu0
    %v140 = vld [vmem:[#allocation7] sm:$0xff]
    %141 = vxpose.xlu0.b32.start [1/16] %v132, 128
    %142 = vxpose.xlu0.b32.cont [2/16] 0.0, 128
    %143 = vxpose.xlu0.b32.cont [3/16] 0.0, 128
    %144 = vxpose.xlu0.b32.cont [4/16] 0.0, 128
    %145 = vxpose.xlu0.b32.cont [5/16] 0.0, 128
    %146 = vxpose.xlu0.b32.cont [6/16] 0.0, 128
    %147 = vxpose.xlu0.b32.cont [7/16] 0.0, 128
    %148 = vxpose.xlu0.b32.cont [8/16] 0.0, 128
    %149 = vxpose.xlu0.b32.cont [9/16] 0.0, 128
    %150 = vxpose.xlu0.b32.cont [10/16] 0.0, 128
    %151 = vxpose.xlu0.b32.cont [11/16] 0.0, 128
    %152 = vxpose.xlu0.b32.cont [12/16] 0.0, 128
    %153 = vxpose.xlu0.b32.cont [13/16] 0.0, 128
    %154 = vxpose.xlu0.b32.cont [14/16] 0.0, 128
    %155 = vxpose.xlu0.b32.cont [15/16] 0.0, 128
    %156 = vxpose.xlu0.b32.end [16/16] 0.0, 128
    %v157 = vpop.trf.xlu0
    %v158 = vpop.trf.xlu0
    %v159 = vpop.trf.xlu0
    %v160 = vpop.trf.xlu0
    %v161 = vpop.trf.xlu0
    %v162 = vpop.trf.xlu0
    %v163 = vpop.trf.xlu0
    %v164 = vpop.trf.xlu0
    %v165 = vpop.trf.xlu0
    %v166 = vpop.trf.xlu0
    %v167 = vpop.trf.xlu0
    %v168 = vpop.trf.xlu0
    %v169 = vpop.trf.xlu0
    %v170 = vpop.trf.xlu0
    %v171 = vpop.trf.xlu0
    %v172 = vpop.trf.xlu0
    %vm173 = vcmask 64512
    %v175 = vsel %vm173, %v157, 0
    %v178 = vsel %vm173, %v158, 0
    %180 = vmatprep.subr.mxu0 0.0
    %181 = vmatpush1.msra.mxu0 0.0
    %182 = vmatprep.subr.mxu0 0.0
    %183 = vmatpush1.msra.mxu0 0.0
    %184 = vmatprep.subr.mxu0 0.0
    %185 = vmatpush1.msra.mxu0 0.0
    %186 = vmatprep.subr.mxu0 0.0
    %187 = vmatpush1.msra.mxu0 0.0
    %188 = vmatprep.subr.mxu0 0.0
    %189 = vmatpush1.msra.mxu0 0.0
    %190 = vmatprep.subr.mxu0 0.0
    %191 = vmatpush1.msra.mxu0 0.0
    %192 = vmatprep.subr.mxu0 0.0
    %193 = vmatpush1.msra.mxu0 0.0
    %194 = vmatprep.subr.mxu0 0.0
    %195 = vmatpush1.msra.mxu0 0.0
    %196 = vmatprep.subr.mxu0 0.0
    %197 = vmatpush1.msra.mxu0 0.0
    %198 = vmatprep.subr.mxu0 0.0
    %199 = vmatpush1.msra.mxu0 0.0
    %200 = vmatprep.subr.mxu0 0.0
    %201 = vmatpush1.msra.mxu0 0.0
    %202 = vmatprep.subr.mxu0 0.0
    %203 = vmatpush1.msra.mxu0 0.0
    %204 = vmatprep.subr.mxu0 0.0
    %205 = vmatpush1.msra.mxu0 0.0
    %206 = vmatprep.subr.mxu0 0.0
    %207 = vmatpush1.msra.mxu0 0.0
    %208 = vmatprep.subr.mxu0 0.0
    %209 = vmatpush1.msra.mxu0 0.0
    %210 = vmatprep.subr.mxu0 0.0
    %211 = vmatpush1.msra.mxu0 %v140
    %212 = vmatprep.subr.mxu0 0.0
    %213 = vmatpush2.msra.mxu0 0.0
    %214 = vmatprep.subr.mxu0 0.0
    %215 = vmatpush2.msra.mxu0 0.0
    %216 = vmatprep.subr.mxu0 0.0
    %217 = vmatpush2.msra.mxu0 0.0
    %218 = vmatprep.subr.mxu0 0.0
    %219 = vmatpush2.msra.mxu0 0.0
    %220 = vmatprep.subr.mxu0 0.0
    %221 = vmatpush2.msra.mxu0 0.0
    %222 = vmatprep.subr.mxu0 0.0
    %223 = vmatpush2.msra.mxu0 0.0
    %224 = vmatprep.subr.mxu0 0.0
    %225 = vmatpush2.msra.mxu0 0.0
    %226 = vmatprep.subr.mxu0 0.0
    %227 = vmatpush2.msra.mxu0 0.0
    %228 = vmatprep.subr.mxu0 0.0
    %229 = vmatpush2.msra.mxu0 0.0
    %230 = vmatprep.subr.mxu0 0.0
    %231 = vmatpush2.msra.mxu0 0.0
    %232 = vmatprep.subr.mxu0 0.0
    %233 = vmatpush2.msra.mxu0 0.0
    %234 = vmatprep.subr.mxu0 0.0
    %235 = vmatpush2.msra.mxu0 0.0
    %236 = vmatprep.subr.mxu0 0.0
    %237 = vmatpush2.msra.mxu0 0.0
    %238 = vmatprep.subr.mxu0 0.0
    %239 = vmatpush2.msra.mxu0 0.0
    %240 = vmatprep.subr.mxu0 0.0
    %241 = vmatpush2.msra.mxu0 0.0
    %242 = vmatprep.subr.mxu0 0.0
    %243 = vmatpush2.msra.mxu0 0.0
    %244 = vmatprep.mubr.f32.mxu0 0.0
    %245 = vmatmul.mubr.f32.gmra.mxu0 %v175
    %v246 = vpop.f32.mrf.mxu0
    %v247 = vadd.f32 0.0, %v246
    %v248 = vpop.f32.mrf.mxu0
    %249 = vmatprep.mubr.f32.mxu0 0.0
    %250 = vmatmul.mubr.f32.gmra.mxu0 %v178
    %v251 = vpop.f32.mrf.mxu0
    %v252 = vadd.f32 0.0, %v251
    %v253 = vpop.f32.mrf.mxu0
    %254 = vdwg.mxu0
    %v255 = vtanh.pop %v247
    %v256 = vtanh.pop %v252
    %vm257 = vcmask 261120
    %258 = vst.msk [vmem:[#allocation8] sm:$0xff] %vm257, %v255
    %259 = vst.msk [vmem:[#allocation8 + $0x8] sm:$0xff] %vm257, %v256
    %260 = vxpose.xlu0.b32.start [1/16] %v137, 128
    %261 = vxpose.xlu0.b32.cont [2/16] 0.0, 128
    %262 = vxpose.xlu0.b32.cont [3/16] 0.0, 128
    %263 = vxpose.xlu0.b32.cont [4/16] 0.0, 128
    %264 = vxpose.xlu0.b32.cont [5/16] 0.0, 128
    %265 = vxpose.xlu0.b32.cont [6/16] 0.0, 128
    %266 = vxpose.xlu0.b32.cont [7/16] 0.0, 128
    %267 = vxpose.xlu0.b32.cont [8/16] 0.0, 128
    %268 = vxpose.xlu0.b32.cont [9/16] 0.0, 128
    %269 = vxpose.xlu0.b32.cont [10/16] 0.0, 128
    %270 = vxpose.xlu0.b32.cont [11/16] 0.0, 128
    %271 = vxpose.xlu0.b32.cont [12/16] 0.0, 128
    %272 = vxpose.xlu0.b32.cont [13/16] 0.0, 128
    %273 = vxpose.xlu0.b32.cont [14/16] 0.0, 128
    %274 = vxpose.xlu0.b32.cont [15/16] 0.0, 128
    %275 = vxpose.xlu0.b32.end [16/16] 0.0, 128
    %v276 = vpop.trf.xlu0
    %v277 = vpop.trf.xlu0
    %v278 = vpop.trf.xlu0
    %v279 = vpop.trf.xlu0
    %v280 = vpop.trf.xlu0
    %v281 = vpop.trf.xlu0
    %v282 = vpop.trf.xlu0
    %v283 = vpop.trf.xlu0
    %v284 = vpop.trf.xlu0
    %v285 = vpop.trf.xlu0
    %v286 = vpop.trf.xlu0
    %v287 = vpop.trf.xlu0
    %v288 = vpop.trf.xlu0
    %v289 = vpop.trf.xlu0
    %v290 = vpop.trf.xlu0
    %v291 = vpop.trf.xlu0
    %v293 = vsel %vm173, %v276, 0
    %v296 = vsel %vm173, %v277, 0
    %298 = vmatprep.subr.mxu0 0.0
    %299 = vmatpush1.msra.mxu0 0.0
    %300 = vmatprep.subr.mxu0 0.0
    %301 = vmatpush1.msra.mxu0 0.0
    %302 = vmatprep.subr.mxu0 0.0
    %303 = vmatpush1.msra.mxu0 0.0
    %304 = vmatprep.subr.mxu0 0.0
    %305 = vmatpush1.msra.mxu0 0.0
    %306 = vmatprep.subr.mxu0 0.0
    %307 = vmatpush1.msra.mxu0 0.0
    %308 = vmatprep.subr.mxu0 0.0
    %309 = vmatpush1.msra.mxu0 0.0
    %310 = vmatprep.subr.mxu0 0.0
    %311 = vmatpush1.msra.mxu0 0.0
    %312 = vmatprep.subr.mxu0 0.0
    %313 = vmatpush1.msra.mxu0 0.0
    %314 = vmatprep.subr.mxu0 0.0
    %315 = vmatpush1.msra.mxu0 0.0
    %316 = vmatprep.subr.mxu0 0.0
    %317 = vmatpush1.msra.mxu0 0.0
    %318 = vmatprep.subr.mxu0 0.0
    %319 = vmatpush1.msra.mxu0 0.0
    %320 = vmatprep.subr.mxu0 0.0
    %321 = vmatpush1.msra.mxu0 0.0
    %322 = vmatprep.subr.mxu0 0.0
    %323 = vmatpush1.msra.mxu0 0.0
    %324 = vmatprep.subr.mxu0 0.0
    %325 = vmatpush1.msra.mxu0 0.0
    %326 = vmatprep.subr.mxu0 0.0
    %327 = vmatpush1.msra.mxu0 0.0
    %328 = vmatprep.subr.mxu0 0.0
    %329 = vmatpush1.msra.mxu0 %v140
    %330 = vmatprep.subr.mxu0 0.0
    %331 = vmatpush2.msra.mxu0 0.0
    %332 = vmatprep.subr.mxu0 0.0
    %333 = vmatpush2.msra.mxu0 0.0
    %334 = vmatprep.subr.mxu0 0.0
    %335 = vmatpush2.msra.mxu0 0.0
    %336 = vmatprep.subr.mxu0 0.0
    %337 = vmatpush2.msra.mxu0 0.0
    %338 = vmatprep.subr.mxu0 0.0
    %339 = vmatpush2.msra.mxu0 0.0
    %340 = vmatprep.subr.mxu0 0.0
    %341 = vmatpush2.msra.mxu0 0.0
    %342 = vmatprep.subr.mxu0 0.0
    %343 = vmatpush2.msra.mxu0 0.0
    %344 = vmatprep.subr.mxu0 0.0
    %345 = vmatpush2.msra.mxu0 0.0
    %346 = vmatprep.subr.mxu0 0.0
    %347 = vmatpush2.msra.mxu0 0.0
    %348 = vmatprep.subr.mxu0 0.0
    %349 = vmatpush2.msra.mxu0 0.0
    %350 = vmatprep.subr.mxu0 0.0
    %351 = vmatpush2.msra.mxu0 0.0
    %352 = vmatprep.subr.mxu0 0.0
    %353 = vmatpush2.msra.mxu0 0.0
    %354 = vmatprep.subr.mxu0 0.0
    %355 = vmatpush2.msra.mxu0 0.0
    %356 = vmatprep.subr.mxu0 0.0
    %357 = vmatpush2.msra.mxu0 0.0
    %358 = vmatprep.subr.mxu0 0.0
    %359 = vmatpush2.msra.mxu0 0.0
    %360 = vmatprep.subr.mxu0 0.0
    %361 = vmatpush2.msra.mxu0 0.0
    %362 = vmatprep.mubr.f32.mxu0 0.0
    %363 = vmatmul.mubr.f32.gmra.mxu0 %v293
    %v364 = vpop.f32.mrf.mxu0
    %v365 = vadd.f32 0.0, %v364
    %v366 = vpop.f32.mrf.mxu0
    %367 = vmatprep.mubr.f32.mxu0 0.0
    %368 = vmatmul.mubr.f32.gmra.mxu0 %v296
    %v369 = vpop.f32.mrf.mxu0
    %v370 = vadd.f32 0.0, %v369
    %v371 = vpop.f32.mrf.mxu0
    %372 = vdwg.mxu0
    %v373 = vtanh.pop %v365
    %v374 = vtanh.pop %v370
    %s375 = scalar_lea.vmem [#allocation8], 16
    %376 = vst.msk [vmem:[%s375] sm:$0xff] %vm257, %v373
    %377 = vst.msk [vmem:[%s375 + $0x8] sm:$0xff] %vm257, %v374
    // Predicated region
    $region26: #{_fwd_small.1} parent=1 // pred_check
      _
    $region27: #{_fwd_small.1} parent=1 // pred_check_branch
      %379 = sbr.rel (0) target = $region29
    $region28: #{_fwd_small.1} parent=1 // pred_region
      %s381 = ssub.s32 512, 512
      %382 = vsyncadd [#allocation4], %s381
      %s383 = sshll.u32 [#allocation8], 4
      %s384 = int_to_ptr.vmem [resolvable:$true] %s383
      %389 = dma.vmem_to_hbm [thread:$0]  %s384, 512, %s3, [#allocation4], 128, 128, 8
    $region29: #{_fwd_small.1} parent=1 // pred_fallthru
      _
    // Predicated region
    $region30: #{_fwd_small.1} parent=1 // pred_check
      _
    $region31: #{_fwd_small.1} parent=1 // pred_check_branch
      %391 = sbr.rel (0) target = $region33
    $region32: #{_fwd_small.1} parent=1 // pred_region
      %392 = dma.done [#allocation4], 512
    $region33: #{_fwd_small.1} parent=1 // pred_fallthru
      _
    %393 = vsyncpa [#allocation3], 1
    %394 = vsyncpa [#allocation6], 1
    %395 = vsyncpa [#allocation4], 1

</llo_original>
